<compile_context>
chip_gen: v5e
topology: v5e:2x2
jax: 0.10.0
libtpu: 0.0.40
codegen_flags: <defaults>
</compile_context>

<pallas_src>
import jax
import jax.numpy as jnp
import numpy as np
from jax.experimental import pallas as pl
from jax.experimental.pallas import tpu as pltpu

EPS = 1e-5      # nn.BatchNorm1d default eps
LANE = 128


def _round_up(x, m):
    return (x + m - 1) // m * m


def _pick_tile(n, target=1024):
    """Largest multiple-of-8 divisor of n that is <= target (else n itself)."""
    best = None
    t = 8
    while t <= min(target, n):
        if n % t == 0:
            best = t
        t += 8
    return best if best is not None else n


def _vmem_limit(tn, cin, c1p, c2p):
    f = 4
    est = (2 * tn * cin * f                     # double-buffered x tile
           + 2 * (cin * c1p + c1p * c2p) * f    # weights (double-buffered)
           + 8 * (c1p + c2p) * f                # scale/shift/stats vectors
           + 3 * tn * (c1p + c2p) * f)          # live activation intermediates
    return int(min(max(2 * est, 16 * 2**20), 48 * 2**20))


# --------------------------- kernels ---------------------------------------


def _stats1_kernel(x_ref, w1_ref, st_ref):
    """Per-batch partial (sum, sumsq) of layer-1 pre-BN output."""
    @pl.when(pl.program_id(1) == 0)
    def _():
        st_ref[...] = jnp.zeros_like(st_ref)

    x = x_ref[0]                                                      # (TN, Cin)
    y = jnp.dot(x, w1_ref[...], preferred_element_type=jnp.float32)   # (TN, C1p)
    s = jnp.sum(y, axis=0, keepdims=True)
    q = jnp.sum(y * y, axis=0, keepdims=True)
    st_ref[0] = st_ref[0] + jnp.concatenate([s, q], axis=0)


def _stats2_kernel(x_ref, w1_ref, sc1_ref, sh1_ref, w2_ref, st_ref):
    """Per-batch partial (sum, sumsq) of layer-2 pre-BN output."""
    @pl.when(pl.program_id(1) == 0)
    def _():
        st_ref[...] = jnp.zeros_like(st_ref)

    x = x_ref[0]
    y1 = jnp.dot(x, w1_ref[...], preferred_element_type=jnp.float32)
    h1 = jnp.maximum(y1 * sc1_ref[...] + sh1_ref[...], 0.0)           # folded BN + ReLU
    y2 = jnp.dot(h1, w2_ref[...], preferred_element_type=jnp.float32)
    s = jnp.sum(y2, axis=0, keepdims=True)
    q = jnp.sum(y2 * y2, axis=0, keepdims=True)
    st_ref[0] = st_ref[0] + jnp.concatenate([s, q], axis=0)


def _apply_kernel(x_ref, w1_ref, sc1_ref, sh1_ref, w2_ref, sc2_ref, sh2_ref,
                  out_ref):
    """Apply both folded BN layers + ReLU and fuse the per-batch max."""
    @pl.when(pl.program_id(1) == 0)
    def _():
        out_ref[...] = jnp.full(out_ref.shape, -jnp.inf, dtype=out_ref.dtype)

    x = x_ref[0]
    y1 = jnp.dot(x, w1_ref[...], preferred_element_type=jnp.float32)
    h1 = jnp.maximum(y1 * sc1_ref[...] + sh1_ref[...], 0.0)
    y2 = jnp.dot(h1, w2_ref[...], preferred_element_type=jnp.float32)
    h2 = jnp.maximum(y2 * sc2_ref[...] + sh2_ref[...], 0.0)
    out_ref[0] = jnp.maximum(out_ref[0], jnp.max(h2, axis=0, keepdims=True))


# --------------------------- wrapper ----------------------------------------


def _bn_fold(partial_stats, count, gamma_p, beta_p):
    """(B, 2, Cp) per-batch partial sums -> (1, Cp) folded scale/shift."""
    tot = jnp.sum(partial_stats, axis=0)                      # (2, Cp)
    mean = tot[0] / count
    var = jnp.maximum(tot[1] / count - mean * mean, 0.0)      # biased var, clamp fp
    scale = gamma_p * jax.lax.rsqrt(var + EPS)
    shift = beta_p - mean * scale
    return scale.reshape(1, -1), shift.reshape(1, -1)


def pointnet_encoder(x, params):
    """x: (B, N, C_in) float32; params: [(W, b, gamma, beta)] for 2 layers."""
    B, N, Cin = x.shape
    (w1, b1, g1, be1), (w2, b2, g2, be2) = params
    del b1, b2  # conv bias is cancelled exactly by the BN mean subtraction
    C1, C2 = w1.shape[0], w2.shape[0]
    C1p, C2p = _round_up(C1, LANE), _round_up(C2, LANE)
    f32 = jnp.float32

    # Lane-dense, zero-padded parameter layout.
    x = x.astype(f32)
    w1p = jnp.zeros((Cin, C1p), f32).at[:, :C1].set(w1.T.astype(f32))
    w2p = jnp.zeros((C1p, C2p), f32).at[:C1, :C2].set(w2.T.astype(f32))
    g1p = jnp.zeros((C1p,), f32).at[:C1].set(g1.astype(f32))
    be1p = jnp.zeros((C1p,), f32).at[:C1].set(be1.astype(f32))
    g2p = jnp.zeros((C2p,), f32).at[:C2].set(g2.astype(f32))
    be2p = jnp.zeros((C2p,), f32).at[:C2].set(be2.astype(f32))

    TN = _pick_tile(N)
    n_tiles = N // TN
    grid = (B, n_tiles)
    count = float(B * N)

    cparams = pltpu.CompilerParams(
        dimension_semantics=("parallel", "arbitrary"),
        vmem_limit_bytes=_vmem_limit(TN, Cin, C1p, C2p),
    )

    x_spec = pl.BlockSpec((1, TN, Cin), lambda b, n: (b, n, 0))
    w1_spec = pl.BlockSpec((Cin, C1p), lambda b, n: (0, 0))
    w2_spec = pl.BlockSpec((C1p, C2p), lambda b, n: (0, 0))
    v1_spec = pl.BlockSpec((1, C1p), lambda b, n: (0, 0))
    v2_spec = pl.BlockSpec((1, C2p), lambda b, n: (0, 0))

    # Pass 1: layer-1 pre-BN statistics (one-pass sum / sumsq).
    st1 = pl.pallas_call(
        _stats1_kernel,
        grid=grid,
        in_specs=[x_spec, w1_spec],
        out_specs=pl.BlockSpec((1, 2, C1p), lambda b, n: (b, 0, 0)),
        out_shape=jax.ShapeDtypeStruct((B, 2, C1p), f32),
        compiler_params=cparams,
    )(x, w1p)
    sc1, sh1 = _bn_fold(st1, count, g1p, be1p)

    # Pass 2: layer-2 pre-BN statistics (recompute cheap layer-1 matmul).
    st2 = pl.pallas_call(
        _stats2_kernel,
        grid=grid,
        in_specs=[x_spec, w1_spec, v1_spec, v1_spec, w2_spec],
        out_specs=pl.BlockSpec((1, 2, C2p), lambda b, n: (b, 0, 0)),
        out_shape=jax.ShapeDtypeStruct((B, 2, C2p), f32),
        compiler_params=cparams,
    )(x, w1p, sc1, sh1, w2p)
    sc2, sh2 = _bn_fold(st2, count, g2p, be2p)

    # Pass 3: apply folded BN + ReLU, fused per-batch running max.
    out = pl.pallas_call(
        _apply_kernel,
        grid=grid,
        in_specs=[x_spec, w1_spec, v1_spec, v1_spec, w2_spec, v2_spec, v2_spec],
        out_specs=pl.BlockSpec((1, 1, C2p), lambda b, n: (b, 0, 0)),
        out_shape=jax.ShapeDtypeStruct((B, 1, C2p), f32),
        compiler_params=cparams,
    )(x, w1p, sc1, sh1, w2p, sc2, sh2)

    return out[:, 0, :C2]


# --------------------------- reference & demo --------------------------------


def _reference(x, params):
    h = x.astype(jnp.float32)
    for (w, b, g, be) in params:
        y = jnp.einsum('bnc,oc->bno', h, w.astype(jnp.float32)) + b
        mean = jnp.mean(y, axis=(0, 1))
        var = jnp.mean(jnp.square(y - mean), axis=(0, 1))
        y = (y - mean) * jax.lax.rsqrt(var + EPS) * g + be
        h = jnp.maximum(y, 0.0)
    return jnp.max(h, axis=1)


if __name__ == "__main__":
    key = jax.random.PRNGKey(0)
    B, N, Cin = 2, 16, 4
    mlp = (32, 64)

    keys = iter(jax.random.split(key, 2 * len(mlp) + 1))
    x = jax.random.normal(next(keys), (B, N, Cin), dtype=jnp.float32)

    # Deterministic synthetic parameters (shapes match Conv1d/BatchNorm1d init).
    params = []
    last = Cin
    for c in mlp:
        w = 0.1 * jax.random.normal(next(keys), (c, last), dtype=jnp.float32)
        b = 0.1 * jax.random.normal(next(keys), (c,), dtype=jnp.float32)
        g = jnp.ones((c,), dtype=jnp.float32)     # BN gamma default init
        be = jnp.zeros((c,), dtype=jnp.float32)   # BN beta default init
        params.append((w, b, g, be))
        last = c

    out = pointnet_encoder(x, params)
    jax.block_until_ready(out)
    ref = _reference(x, params)

    assert out.shape == (B, mlp[-1]) and out.dtype == jnp.float32
    np.testing.assert_allclose(np.asarray(out), np.asarray(ref),
                               rtol=1e-4, atol=1e-4)
    print("KERNEL_OK")
</pallas_src>

<mosaic_0001>
module attributes {stable_mosaic.version = 11 : i64} {
  func.func @_stats1_kernel(%arg0: i32, %arg1: i32, %arg2: memref<1x16x4xf32, #tpu.memory_space<vmem>>, %arg3: memref<4x128xf32, #tpu.memory_space<vmem>>, %arg4: memref<1x2x128xf32, #tpu.memory_space<vmem>>) attributes {dimension_semantics = [#tpu.dimension_semantics<parallel>, #tpu.dimension_semantics<arbitrary>], iteration_bounds = array<i64: 2, 1>, scalar_prefetch = 0 : i64, scratch_operands = 0 : i64, tpu.core_type = #tpu.core_type<tc>, window_params = [{transform_indices = @transform_0, window_bounds = array<i64: 1, 16, 4>}, {pipeline_mode = #tpu.pipeline_mode<synchronous>, transform_indices = @transform_1, window_bounds = array<i64: 4, 128>}, {transform_indices = @transform_2, window_bounds = array<i64: 1, 2, 128>}]} {
    %c0_i32 = arith.constant 0 : i32
    %0 = arith.cmpi eq, %arg1, %c0_i32 : i32
    %1 = arith.extui %0 : i1 to i32
    %c0_i32_0 = arith.constant 0 : i32
    %2 = arith.cmpi ne, %1, %c0_i32_0 : i32
    scf.if %2 {
      %cst_13 = arith.constant 0.000000e+00 : f32
      %19 = vector.broadcast %cst_13 : f32 to vector<1x2x128xf32>
      %c0_14 = arith.constant 0 : index
      %c0_15 = arith.constant 0 : index
      %c0_16 = arith.constant 0 : index
      %20 = vector.load %arg4[%c0_14, %c0_15, %c0_16] : memref<1x2x128xf32, #tpu.memory_space<vmem>>, vector<1x2x128xf32>
      tpu.vector_store %arg4[%c0_14, %c0_15, %c0_16], %19 {strides = array<i32>} : memref<1x2x128xf32, #tpu.memory_space<vmem>>, vector<1x2x128xf32>,
    } else {
    }
    %c0 = arith.constant 0 : index
    %c0_1 = arith.constant 0 : index
    %c0_2 = arith.constant 0 : index
    %3 = vector.load %arg2[%c0, %c0_1, %c0_2] : memref<1x16x4xf32, #tpu.memory_space<vmem>>, vector<1x16x4xf32>
    %4 = vector.shape_cast %3 : vector<1x16x4xf32> to vector<16x4xf32>
    %c0_3 = arith.constant 0 : index
    %c0_4 = arith.constant 0 : index
    %5 = vector.load %arg3[%c0_3, %c0_4] : memref<4x128xf32, #tpu.memory_space<vmem>>, vector<4x128xf32>
    %cst = arith.constant dense<0.000000e+00> : vector<16x128xf32>
    %6 = tpu.matmul %4, %5, %cst {dimension_numbers = #tpu.dot_dimension_numbers<[1], [0], [0], [1], [0, 0, 1, 1], [], []>} : vector<16x4xf32>, vector<4x128xf32>, vector<16x128xf32> -> vector<16x128xf32>
    %cst_5 = arith.constant dense<0.000000e+00> : vector<128xf32>
    %7 = vector.multi_reduction <add>, %6, %cst_5 [0] : vector<16x128xf32> to vector<128xf32>
    %8 = vector.shape_cast %7 : vector<128xf32> to vector<1x128xf32>
    %9 = arith.mulf %6, %6 : vector<16x128xf32>
    %cst_6 = arith.constant dense<0.000000e+00> : vector<128xf32>
    %10 = vector.multi_reduction <add>, %9, %cst_6 [0] : vector<16x128xf32> to vector<128xf32>
    %11 = vector.shape_cast %10 : vector<128xf32> to vector<1x128xf32>
    %c0_7 = arith.constant 0 : index
    %c0_8 = arith.constant 0 : index
    %c0_9 = arith.constant 0 : index
    %12 = vector.load %arg4[%c0_7, %c0_8, %c0_9] : memref<1x2x128xf32, #tpu.memory_space<vmem>>, vector<1x2x128xf32>
    %13 = vector.shape_cast %12 : vector<1x2x128xf32> to vector<2x128xf32>
    %14 = tpu.concatenate %8, %11 in 0 : vector<1x128xf32>, vector<1x128xf32> -> vector<2x128xf32>
    %15 = arith.addf %13, %14 : vector<2x128xf32>
    %c0_10 = arith.constant 0 : index
    %c0_11 = arith.constant 0 : index
    %c0_12 = arith.constant 0 : index
    %16 = vector.load %arg4[%c0_10, %c0_11, %c0_12] : memref<1x2x128xf32, #tpu.memory_space<vmem>>, vector<1x2x128xf32>
    %17 = vector.shape_cast %16 : vector<1x2x128xf32> to vector<2x128xf32>
    %18 = vector.shape_cast %15 : vector<2x128xf32> to vector<1x2x128xf32>
    tpu.vector_store %arg4[%c0_10, %c0_11, %c0_12], %18 {strides = array<i32>} : memref<1x2x128xf32, #tpu.memory_space<vmem>>, vector<1x2x128xf32>,
    return
  }
  func.func @transform_0(%arg0: i32, %arg1: i32) -> (i32, i32, i32) {
    %c0_i32 = arith.constant 0 : i32
    %c0_i32_0 = arith.constant 0 : i32
    return %arg0, %arg1, %c0_i32 : i32, i32, i32
  }
  func.func @transform_1(%arg0: i32, %arg1: i32) -> (i32, i32) {
    %c0_i32 = arith.constant 0 : i32
    %c0_i32_0 = arith.constant 0 : i32
    %c0_i32_1 = arith.constant 0 : i32
    return %c0_i32, %c0_i32_0 : i32, i32
  }
  func.func @transform_2(%arg0: i32, %arg1: i32) -> (i32, i32, i32) {
    %c0_i32 = arith.constant 0 : i32
    %c0_i32_0 = arith.constant 0 : i32
    %c0_i32_1 = arith.constant 0 : i32
    return %arg0, %c0_i32, %c0_i32_0 : i32, i32, i32
  }
}

</mosaic_0001>

<llo_original>
// kernel: tpu_custom_call.1
$region0: #{tpu_custom_call.1}
  #allocation0 [shape = 'u32[]', space=smem, size = 0x4, offset = 0x4, fixed_abs, tag = 'smem constant byte address 0x4 - core index']
  #allocation1 [shape = 'u32[72,128]{1,0:T(1,128)}', space=vmem, size = 0x9000, scoped, tag = 'internal scratch']
  %s0 = inlined_call_operand.vmem [shape: f32[2,16,4], index: 0, kind: input, shape index: {}]
  %s1 = inlined_call_operand.vmem [shape: f32[4,128], index: 1, kind: input, shape index: {}]
  %s2 = inlined_call_operand.hbm [shape: f32[2,2,128], index: 2, kind: output, shape index: {}]
  %s3 = sld [smem:[#allocation0]]
  $region45: #{tpu_custom_call.1} parent=0
    _
  %s5 = ssub.s32 1, %s3
  %s6 = scalar_select 0, %s5, %s3
  $region1: #{tpu_custom_call.1} parent=0
    #allocation2 [shape = 'u8[2048]{0}', space=vmem, size = 0x800, scoped, tag = 'output window, operand 0']
    #allocation3 [shape = 's32[2]{0}', space=sflag, size = 0x8, scoped, tag = 'scoped memory for tpu_custom_call.1']
    %7 = vsyncpa [#allocation3], 0
    %s8 = scalar_lea.sflag [#allocation3], 1
    %9 = vsyncpa %s8, 0
    loop: start=0, step=1, limit=4
    $region2: #{tpu_custom_call.1} parent=1 // loop_pre_header
      _
    $region3: #{tpu_custom_call.1} parent=1 // loop_header
      %s11 = sphi 0, %s15
      %p12 = scmp.ge.s32.totalorder %s11, 4
      %s18 = sphi 0, %s30
      %s19 = sphi 0, %s26
      %s20 = sphi 0, %s18
      %s21 = sphi 0, %s19
      %s22 = sphi 0, %s20
      %s23 = sphi 0, %s21
      %s35 = sphi 0, %s37
      %s38 = sphi 0, %s35
      %s39 = sphi 0, %s38
      %s55 = sphi 0, %s39
      %s59 = sphi 0, %s59
      %s61 = sphi 0, %s59
      %s62 = sphi 0, %s61
      %s76 = sphi 0, %s62
      %s82 = sphi 0, %s84
      %s85 = sphi 0, %s82
      %s86 = sphi 0, %s85
      %s102 = sphi 0, %s86
    $region4: #{tpu_custom_call.1} parent=1 // loop_header_branch
      %14 = sbr.rel (%p12) target = $region8
    $region5: #{tpu_custom_call.1} parent=1 // loop_body
      %s16 = ssub.s32 %s11, 1
      %s17 = ssub.s32 %s11, 2
      %s24 = sadd.s32 1, %s19
      %p25 = scmp.ge.s32.totalorder %s24, 1
      %s26 = scalar_select %p25, 0, %s24
      %s27 = sadd.s32 1, %s18
      %s28 = scalar_select %p25, %s27, %s18
      %p29 = scmp.ge.s32.totalorder %s28, 2
      %s30 = scalar_select %p29, 0, %s28
      %s31 = ssub.s32 %s18, %s30
      %s32 = ssub.s32 %s19, %s26
      %s33 = sor.u32 %s31, %s32
      %p34 = scmp.eq.s32.totalorder %s33, 0
      %s36 = sadd.s32 %s35, 1
      %s37 = scalar_select %p34, %s35, %s36
      %p40 = pneg %p34
      %p41 = scmp.eq.s32.totalorder %s11, 1
      %p42 = por %p40, %p41
      %p43 = scmp.ne.s32.totalorder %s35, %s38
      %p44 = scmp.eq.s32.totalorder %s11, 0
      %p45 = por %p43, %p44
      %p46 = scmp.ne.s32.totalorder %s35, %s38
      %p47 = scmp.eq.s32.totalorder %s16, 1
      %p48 = por %p46, %p47
      %p49 = scmp.ne.s32.totalorder %s38, %s39
      %p50 = scmp.eq.s32.totalorder %s16, 0
      %p51 = por %p49, %p50
      %p52 = scmp.ne.s32.totalorder %s38, %s39
      %p53 = scmp.eq.s32.totalorder %s17, 1
      %p54 = por %p52, %p53
      %p56 = scmp.ne.s32.totalorder %s39, %s55
      %p57 = scmp.eq.s32.totalorder %s17, 0
      %p58 = por %p56, %p57
      %s60 = sadd.s32 %s59, 1
      %p63 = scmp.eq.s32.totalorder %s11, 1
      %p64 = scmp.ne.s32.totalorder %s59, %s61
      %p65 = scmp.eq.s32.totalorder %s11, 0
      %p66 = por %p64, %p65
      %p67 = scmp.ne.s32.totalorder %s59, %s61
      %p68 = scmp.eq.s32.totalorder %s16, 1
      %p69 = por %p67, %p68
      %p70 = scmp.ne.s32.totalorder %s61, %s62
      %p71 = scmp.eq.s32.totalorder %s16, 0
      %p72 = por %p70, %p71
      %p73 = scmp.ne.s32.totalorder %s61, %s62
      %p74 = scmp.eq.s32.totalorder %s17, 1
      %p75 = por %p73, %p74
      %p77 = scmp.ne.s32.totalorder %s62, %s76
      %p78 = scmp.eq.s32.totalorder %s17, 0
      %p79 = por %p77, %p78
      %s80 = ssub.s32 %s18, %s30
      %p81 = scmp.eq.s32.totalorder %s80, 0
      %s83 = sadd.s32 %s82, 1
      %s84 = scalar_select %p81, %s82, %s83
      %p87 = pneg %p81
      %p88 = scmp.eq.s32.totalorder %s11, 1
      %p89 = por %p87, %p88
      %p90 = scmp.ne.s32.totalorder %s82, %s85
      %p91 = scmp.eq.s32.totalorder %s11, 0
      %p92 = por %p90, %p91
      %p93 = scmp.ne.s32.totalorder %s82, %s85
      %p94 = scmp.eq.s32.totalorder %s16, 1
      %p95 = por %p93, %p94
      %p96 = scmp.ne.s32.totalorder %s85, %s86
      %p97 = scmp.eq.s32.totalorder %s16, 0
      %p98 = por %p96, %p97
      %p99 = scmp.ne.s32.totalorder %s85, %s86
      %p100 = scmp.eq.s32.totalorder %s17, 1
      %p101 = por %p99, %p100
      %p103 = scmp.ne.s32.totalorder %s86, %s102
      %p104 = scmp.eq.s32.totalorder %s17, 0
      %p105 = por %p103, %p104
      %p106 = scmp.le.s32.totalorder 1, %s11
      %p107 = scmp.lt.s32.totalorder %s11, 3
      %p108 = pnand %p106, %p107
      %p109 = pneg %p108
      // Predicated region
      $region9: #{tpu_custom_call.1} parent=5 // pred_check
        _
      $region10: #{tpu_custom_call.1} parent=5 // pred_check_branch
        %111 = sbr.rel (%p108) target = $region12
      $region11: #{tpu_custom_call.1} parent=5 // pred_region
        %s112 = ssub.s32 %s11, 1
        // Predicated region
        $region13: #{tpu_custom_call.1} parent=11 // pred_check
          %p113 = pneg %p72
        $region14: #{tpu_custom_call.1} parent=11 // pred_check_branch
          %115 = sbr.rel (%p113) target = $region16
        $region15: #{tpu_custom_call.1} parent=11 // pred_region
          _
        $region16: #{tpu_custom_call.1} parent=11 // pred_fallthru
          _
      $region12: #{tpu_custom_call.1} parent=5 // pred_fallthru
        _
      %p116 = scmp.lt.s32.totalorder %s11, 2
      // Predicated region
      $region17: #{tpu_custom_call.1} parent=5 // pred_check
        %p117 = pneg %p116
      $region18: #{tpu_custom_call.1} parent=5 // pred_check_branch
        %119 = sbr.rel (%p117) target = $region20
      $region19: #{tpu_custom_call.1} parent=5 // pred_region
        // Predicated region
        $region21: #{tpu_custom_call.1} parent=19 // pred_check
          %p120 = pneg %p45
        $region22: #{tpu_custom_call.1} parent=19 // pred_check_branch
          %122 = sbr.rel (%p120) target = $region24
        $region23: #{tpu_custom_call.1} parent=19 // pred_region
          %s123 = smul.u32 2, %s19
          %p124 = scmp.lt.s32.totalorder %s18, 1
          %s125 = scalar_select %p124, %s18, 1
          %p126 = scmp.lt.s32.totalorder %s123, 1
          %s127 = scalar_select %p126, %s123, 1
          %s128 = smul.addr %s125, 2
          %s129 = sadd.s32 %s127, %s128
          %s130 = smul.addr %s129, 8
          %s131 = scalar_lea.vmem %s0, %s130
          %s132 = smul.u32 2, %s19
        $region24: #{tpu_custom_call.1} parent=19 // pred_fallthru
          _
      $region20: #{tpu_custom_call.1} parent=5 // pred_fallthru
        _
      %p133 = scmp.le.s32.totalorder 1, %s11
      %p134 = scmp.lt.s32.totalorder %s11, 3
      %p135 = pnand %p133, %p134
      %p136 = pneg %p135
      // Predicated region
      $region25: #{tpu_custom_call.1} parent=5 // pred_check
        _
      $region26: #{tpu_custom_call.1} parent=5 // pred_check_branch
        %138 = sbr.rel (%p135) target = $region28
      $region27: #{tpu_custom_call.1} parent=5 // pred_region
        %s139 = ssub.s32 %s11, 1
        %s140 = smul.u32 2, %s21
        %p141 = scmp.lt.s32.totalorder %s20, 1
        %s142 = scalar_select %p141, %s20, 1
        %p143 = scmp.lt.s32.totalorder %s140, 1
        %s144 = scalar_select %p143, %s140, 1
        %s145 = smul.addr %s142, 2
        %s146 = sadd.s32 %s144, %s145
        %s147 = smul.addr %s146, 8
        %s148 = scalar_lea.vmem %s0, %s147
        %p149 = pneg %p51
        %p150 = pneg %p48
        %p151 = pneg %p72
        %p152 = pneg %p69
        %p153 = pneg %p98
        %p154 = pneg %p95
        %s155 = sand.u32 %s85, 1
        %s156 = scalar_lea.sflag [#allocation3], %s155
        %s157 = sand.u32 %s85, 1
        %s158 = smul.addr %s157, 2
        %s159 = scalar_lea.vmem [#allocation2], %s158
        %s160 = smul.u32 2, %s21
        %p161 = scmp.lt.s32.totalorder %s20, 1
        %s162 = scalar_select %p161, %s20, 1
        %p163 = scmp.lt.s32.totalorder %s160, 1
        %s164 = scalar_select %p163, %s160, 1
        %s165 = smul.addr %s162, 2
        %s166 = sadd.s32 %s164, %s165
        %s167 = smul.addr %s166, 8
        %s168 = scalar_lea.vmem %s0, %s167
        %s169 = smul.u32 2, %s21
        %p170 = scmp.eq.s32.totalorder %s21, 0
        // Predicated region
        $region29: #{tpu_custom_call.1} parent=27 // pred_check
          %p171 = pneg %p170
        $region30: #{tpu_custom_call.1} parent=27 // pred_check_branch
          %173 = sbr.rel (%p171) target = $region32
        $region31: #{tpu_custom_call.1} parent=27 // pred_region
          %174 = vst [vmem:[%s159] sm:$0x3] 0.0
        $region32: #{tpu_custom_call.1} parent=27 // pred_fallthru
          _
        %v175 = vld [vmem:[%s168] sm:$0xff]
        %v176 = vld [vmem:[%s168 + $0x8] sm:$0xff]
        %v177 = vld [vmem:[%s1] sm:$0xf]
        %vm178 = vcmask 31744
        %v180 = vsel %vm178, %v175, 0
        %v183 = vsel %vm178, %v176, 0
        %vm185 = vcmask 1043456
        %v187 = vsel %vm185, %v177, 0
        %189 = vmatpush.msra.mxu0 0.0
        %190 = vmatpush.msra.mxu0 0.0
        %191 = vmatpush.msra.mxu0 0.0
        %192 = vmatpush.msra.mxu0 0.0
        %193 = vmatpush.msra.mxu0 0.0
        %194 = vmatpush.msra.mxu0 0.0
        %195 = vmatpush.msra.mxu0 0.0
        %196 = vmatpush.msra.mxu0 0.0
        %197 = vmatpush.msra.mxu0 0.0
        %198 = vmatpush.msra.mxu0 0.0
        %199 = vmatpush.msra.mxu0 0.0
        %200 = vmatpush.msra.mxu0 0.0
        %201 = vmatpush.msra.mxu0 0.0
        %202 = vmatpush.msra.mxu0 0.0
        %203 = vmatpush.msra.mxu0 0.0
        %204 = vmatpush.msra.mxu0 %v187
        %205 = vmatmul.f32.gmra.mxu0 %v180
        %v206 = vpop.f32.mrf.mxu0
        %v207 = vadd.f32 0.0, %v206
        %208 = vmatmul.f32.gmra.mxu0 %v183
        %v209 = vpop.f32.mrf.mxu0
        %v210 = vadd.f32 0.0, %v209
        %211 = vdwg.mxu0
        %v212 = vadd.f32 %v207, %v210
        %v213 = vrot.slane %v212, 4
        %v214 = vadd.f32 %v212, %v213
        %v215 = vrot.slane %v214, 2
        %v216 = vadd.f32 %v214, %v215
        %v217 = vrot.slane %v216, 1
        %v218 = vadd.f32 %v216, %v217
        %v219 = vmul.f32 %v207, %v207
        %v220 = vmul.f32 %v210, %v210
        %v221 = vadd.f32 %v219, %v220
        %v222 = vrot.slane %v221, 4
        %v223 = vadd.f32 %v221, %v222
        %v224 = vrot.slane %v223, 2
        %v225 = vadd.f32 %v223, %v224
        %v226 = vrot.slane %v225, 1
        %v227 = vadd.f32 %v225, %v226
        %v228 = vld [vmem:[%s159] sm:$0x3]
        %vm229 = vcmask 1040384
        %v230 = vsel %vm229, %v218, %v227
        %v231 = vadd.f32 %v228, %v230
        %232 = vst [vmem:[%s159] sm:$0x3] %v231
        %s233 = sand.u32 %s85, 1
        %s234 = scalar_lea.sflag [#allocation3], %s233
        %s235 = sand.u32 %s85, 1
        %s236 = smul.addr %s235, 2
        %s237 = scalar_lea.vmem [#allocation2], %s236
        // Predicated region
        $region33: #{tpu_custom_call.1} parent=27 // pred_check
          %p238 = pneg %p95
        $region34: #{tpu_custom_call.1} parent=27 // pred_check_branch
          %240 = sbr.rel (%p238) target = $region36
        $region35: #{tpu_custom_call.1} parent=27 // pred_region
          %242 = vsyncadd %s234, 0
          %s243 = smul.addr %s20, 2
          %s244 = scalar_lea.hbm %s2, %s243
          %s246 = sshll.u32 %s237, 4
          %s247 = int_to_ptr.vmem [resolvable:$true] %s246
          %s248 = sshll.u32 %s244, 4
          %s249 = int_to_ptr.hbm [resolvable:$true] %s248
          %251 = dma.vmem_to_hbm [thread:$0]  %s247, 32, %s249, %s234
        $region36: #{tpu_custom_call.1} parent=27 // pred_fallthru
          _
      $region28: #{tpu_custom_call.1} parent=5 // pred_fallthru
        _
      %p252 = scmp.le.s32.totalorder 2, %s11
      // Predicated region
      $region37: #{tpu_custom_call.1} parent=5 // pred_check
        %p253 = pneg %p252
      $region38: #{tpu_custom_call.1} parent=5 // pred_check_branch
        %255 = sbr.rel (%p253) target = $region40
      $region39: #{tpu_custom_call.1} parent=5 // pred_region
        %s256 = ssub.s32 %s11, 2
        // Predicated region
        $region41: #{tpu_custom_call.1} parent=39 // pred_check
          %p257 = pneg %p101
        $region42: #{tpu_custom_call.1} parent=39 // pred_check_branch
          %259 = sbr.rel (%p257) target = $region44
        $region43: #{tpu_custom_call.1} parent=39 // pred_region
          %s260 = sand.u32 %s86, 1
          %s261 = scalar_lea.sflag [#allocation3], %s260
          %s262 = sand.u32 %s86, 1
          %s263 = smul.addr %s262, 2
          %s264 = scalar_lea.vmem [#allocation2], %s263
          %266 = dma.done %s261, 32
        $region44: #{tpu_custom_call.1} parent=39 // pred_fallthru
          _
      $region40: #{tpu_custom_call.1} parent=5 // pred_fallthru
        _
    $region6: #{tpu_custom_call.1} parent=1 // loop_footer
      %s15 = sadd.s32 1, %s11
    $region7: #{tpu_custom_call.1} parent=1 // loop_footer_branch
      %10 = sbr.rel target = $region3
    $region8: #{tpu_custom_call.1} parent=1 // loop_exit
      _
    %267 = vsyncpa [#allocation3], 1
    %s268 = scalar_lea.sflag [#allocation3], 1
    %269 = vsyncpa %s268, 1

</llo_original>
